<compile_context>
chip_gen: v7x
topology: tpu7x:2x2x1
jax: 0.10.0
libtpu: 0.0.40
codegen_flags: <defaults>
</compile_context>

<pallas_src>
import math
import jax
import jax.numpy as jnp
from jax.experimental import pallas as pl
from jax.experimental.pallas import tpu as pltpu


def gaussian_kernel_1d(sigma):
    """Separable factor of fvvdp's ImGaussFilt 2D kernel (outer(k1d, k1d) == K2d)."""
    fsize = 2 * int(math.ceil(2.0 * sigma)) + 1
    half = (fsize - 1) // 2
    g = [math.exp(-(float(i - half) ** 2) / (2.0 * sigma * sigma)) for i in range(fsize)]
    s = sum(g)
    return [v / s for v in g], fsize, half


def gaussian_kernel_2d(sigma):
    """Same construction as fvvdp's ImGaussFilt.__init__ (pure-JAX reference only)."""
    fsize = 2 * int(math.ceil(2.0 * sigma)) + 1
    half = (fsize - 1) // 2
    K = [[math.exp(-(float(i - half) ** 2 + float(j - half) ** 2) / (2.0 * sigma * sigma))
          for j in range(fsize)] for i in range(fsize)]
    s = sum(sum(row) for row in K)
    return [[v / s for v in row] for row in K], fsize, half


def _vmem_capacity_bytes():
    """Best-effort physical VMEM query; fall back to the smallest (v7x per-TC) size."""
    try:
        cap = getattr(pltpu.get_tpu_info(), "vmem_capacity_bytes", None)
        if cap:
            return int(cap)
    except Exception:
        pass
    return 64 * 1024 * 1024


def make_loss_kernel(k1d, fsize, eps, N, C, Df, H, W):
    """Kernel over one block of Df frames: separable blur + clamp + partial loss sum."""
    Hp = H + (fsize - 1)
    Wp = W + (fsize - 1)

    def kernel(p_ref, r_ref, t_ref, o_ref):
        # p_ref: (Df, Hp, Wp)  reflect-padded R[0, 0] frames
        # r_ref / t_ref: (N, C, Df, H, W)
        img = p_ref[...].astype(jnp.float32)                     # (Df, Hp, Wp)

        # Separable Gaussian blur, vectorized over all Df frames:
        # vertical (sublane-shift) taps, then horizontal (lane-shift) taps.
        tmp = jnp.float32(k1d[0]) * img[:, 0:H, :]               # (Df, H, Wp)
        for ki in range(1, fsize):
            tmp = tmp + jnp.float32(k1d[ki]) * img[:, ki:ki + H, :]
        blur = jnp.float32(k1d[0]) * tmp[:, :, 0:W]              # (Df, H, W)
        for kj in range(1, fsize):
            blur = blur + jnp.float32(k1d[kj]) * tmp[:, :, kj:kj + W]

        # L_bkg = clamp(blur, eps);  |R/L - T/L| == |R - T| * (1/L).
        inv_L = 1.0 / jnp.maximum(blur, jnp.float32(eps))        # exact divide, (Df, H, W)

        R = r_ref[...].astype(jnp.float32)                        # (N, C, Df, H, W)
        T = t_ref[...].astype(jnp.float32)
        diff = jnp.abs(R - T) * inv_L[None, None, :, :, :]

        # Sum of this block's per-frame means (every frame averages N*C*H*W values).
        total = jnp.sum(diff) / jnp.float32(N * C * H * W)

        # Lane-dense scalar writeback (full-vreg unmasked store).
        o_ref[...] = jnp.full((1, 8, 128), total, jnp.float32)

    return kernel


def test_loss_forward(output, target, *, pix_per_deg=2.0, epsilon=1e-3,
                      max_frames_per_block=8):
    """Pallas implementation of TestLoss.forward (mode='blur2_adapt').

    Returns (mean loss over frames, None, None), like the PyTorch module.
    """
    N, C, D, H, W = target.shape
    assert output.shape == target.shape
    assert C == 1, "ImGaussFilt conv2d with a (1,1,f,f) kernel requires C == 1"

    sigma = 0.5 * pix_per_deg                       # blur2_adapt
    k1d, fsize, pad = gaussian_kernel_1d(sigma)
    assert H > pad and W > pad, "reflect padding requires spatial dims > pad"
    Hp, Wp = H + 2 * pad, W + 2 * pad

    # Reflect-pad the blur source (batch 0 / channel 0) once, outside the kernel.
    padded = jnp.pad(output[0, 0], ((0, 0), (pad, pad), (pad, pad)), mode="reflect")

    # Frames per grid step: divisor of D that (a) fits a VMEM budget with double
    # buffering + f32 temporaries, (b) is <= max_frames_per_block, (c) keeps >= 2
    # grid steps when D >= 2 so both TensorCores can be used on megacore parts.
    itemsize = jnp.dtype(output.dtype).itemsize
    frame_in_bytes = (2 * N * C * H * W) * itemsize + Hp * Wp * itemsize       # HBM inputs
    frame_tmp_bytes = 4 * (3 * N * C * H * W + 3 * Hp * Wp)                    # f32 temporaries
    frame_bytes = 2 * frame_in_bytes + frame_tmp_bytes                         # double-buffered
    vmem_cap = _vmem_capacity_bytes()
    budget = int(0.4 * vmem_cap)

    df_cap = min(max_frames_per_block, D)
    if D >= 2:
        df_cap = min(df_cap, max(1, D // 2))
    df_cap = min(df_cap, max(1, budget // max(1, frame_bytes)))
    df_cap = max(1, df_cap)
    Df = max(d for d in range(1, df_cap + 1) if D % d == 0)
    num_blocks = D // Df

    # Scoped-VMEM limit: block working set + margin (clamped to physical VMEM).
    vmem_need = Df * frame_bytes + (2 << 20)
    vmem_limit = int(min(max(vmem_need, 32 << 20), int(0.75 * vmem_cap)))

    kernel = make_loss_kernel(k1d, fsize, epsilon, N, C, Df, H, W)

    out = pl.pallas_call(
        kernel,
        out_shape=jax.ShapeDtypeStruct((num_blocks, 8, 128), jnp.float32),
        grid_spec=pltpu.PrefetchScalarGridSpec(
            num_scalar_prefetch=0,
            grid=(num_blocks,),
            in_specs=[
                pl.BlockSpec((Df, Hp, Wp), lambda d: (d, 0, 0)),            # padded R[0,0]
                pl.BlockSpec((N, C, Df, H, W), lambda d: (0, 0, d, 0, 0)),  # output (R)
                pl.BlockSpec((N, C, Df, H, W), lambda d: (0, 0, d, 0, 0)),  # target (T)
            ],
            out_specs=pl.BlockSpec((1, 8, 128), lambda d: (d, 0, 0)),
        ),
        compiler_params=pltpu.CompilerParams(
            dimension_semantics=("parallel",),
            vmem_limit_bytes=vmem_limit,
        ),
    )(padded, output, target)

    loss = jnp.sum(out[:, 0, 0]) / jnp.float32(D)
    return loss, None, None


def ref_forward(output, target, *, pix_per_deg=2.0, epsilon=1e-3):
    """Pure-JAX reference mirroring the PyTorch forward (for validation)."""
    N, C, D, H, W = target.shape
    sigma = 0.5 * pix_per_deg
    K, fsize, pad = gaussian_kernel_2d(sigma)
    Kj = jnp.asarray(K, jnp.float32)
    losses = []
    for ff in range(D):
        R = output[:, :, ff]
        T = target[:, :, ff]
        img = R[0, 0]
        padded = jnp.pad(img, pad, mode="reflect")
        blur = jnp.zeros((H, W), jnp.float32)
        for ki in range(fsize):
            for kj in range(fsize):
                blur = blur + Kj[ki, kj] * padded[ki:ki + H, kj:kj + W]
        L = jnp.maximum(blur, epsilon)[None, None]
        losses.append(jnp.mean(jnp.abs(R / L - T / L)))
    return jnp.mean(jnp.stack(losses)), None, None


if __name__ == "__main__":
    key = jax.random.PRNGKey(0)
    k1, k2, k3, k4 = jax.random.split(key, 4)

    # Test 1: N=2 batches, C=1 channel (luminance), D=3 frames, 16x16 spatial.
    N, C, D, H, W = 2, 1, 3, 16, 16
    target = jax.random.uniform(k1, (N, C, D, H, W), jnp.float32, 0.1, 1.0)
    output = jax.random.uniform(k2, (N, C, D, H, W), jnp.float32, 0.1, 1.0)

    loss, _, _ = test_loss_forward(output, target, pix_per_deg=2.0, epsilon=1e-3)
    loss = jax.block_until_ready(loss)
    ref, _, _ = ref_forward(output, target, pix_per_deg=2.0, epsilon=1e-3)
    assert jnp.allclose(loss, ref, rtol=2e-5, atol=2e-6), (loss, ref)

    # Test 2: D=8 frames -> multiple frames per grid step (Df=4, 2 grid steps).
    N2, C2, D2, H2, W2 = 1, 1, 8, 16, 16
    target2 = jax.random.uniform(k3, (N2, C2, D2, H2, W2), jnp.float32, 0.1, 1.0)
    output2 = jax.random.uniform(k4, (N2, C2, D2, H2, W2), jnp.float32, 0.1, 1.0)

    loss2, _, _ = test_loss_forward(output2, target2, pix_per_deg=2.0, epsilon=1e-3)
    loss2 = jax.block_until_ready(loss2)
    ref2, _, _ = ref_forward(output2, target2, pix_per_deg=2.0, epsilon=1e-3)
    assert jnp.allclose(loss2, ref2, rtol=2e-5, atol=2e-6), (loss2, ref2)

    print("KERNEL_OK")
</pallas_src>

<mosaic_0001>
module attributes {stable_mosaic.version = 11 : i64} {
  func.func @kernel(%arg0: i32, %arg1: memref<1x20x20xf32, #tpu.memory_space<vmem>>, %arg2: memref<2x1x1x16x16xf32, #tpu.memory_space<vmem>>, %arg3: memref<2x1x1x16x16xf32, #tpu.memory_space<vmem>>, %arg4: memref<1x8x128xf32, #tpu.memory_space<vmem>>) attributes {dimension_semantics = [#tpu.dimension_semantics<parallel>], iteration_bounds = array<i64: 3>, scalar_prefetch = 0 : i64, scratch_operands = 0 : i64, tpu.core_type = #tpu.core_type<tc>, window_params = [{transform_indices = @transform_0, window_bounds = array<i64: 1, 20, 20>}, {transform_indices = @transform_1, window_bounds = array<i64: 2, 1, 1, 16, 16>}, {transform_indices = @transform_2, window_bounds = array<i64: 2, 1, 1, 16, 16>}, {transform_indices = @transform_3, window_bounds = array<i64: 1, 8, 128>}]} {
    %c0 = arith.constant 0 : index
    %c0_0 = arith.constant 0 : index
    %c0_1 = arith.constant 0 : index
    %0 = vector.load %arg1[%c0, %c0_0, %c0_1] : memref<1x20x20xf32, #tpu.memory_space<vmem>>, vector<1x20x20xf32>
    %1 = vector.extract_strided_slice %0 {offsets = [0, 0, 0], sizes = [1, 16, 20], strides = [1, 1, 1]} : vector<1x20x20xf32> to vector<1x16x20xf32>
    %cst = arith.constant 0.054488685 : f32
    %2 = vector.broadcast %cst : f32 to vector<1x16x20xf32>
    %3 = arith.mulf %2, %1 : vector<1x16x20xf32>
    %4 = vector.extract_strided_slice %0 {offsets = [0, 1, 0], sizes = [1, 16, 20], strides = [1, 1, 1]} : vector<1x20x20xf32> to vector<1x16x20xf32>
    %cst_2 = arith.constant 0.244201347 : f32
    %5 = vector.broadcast %cst_2 : f32 to vector<1x16x20xf32>
    %6 = arith.mulf %5, %4 : vector<1x16x20xf32>
    %7 = arith.addf %3, %6 : vector<1x16x20xf32>
    %8 = vector.extract_strided_slice %0 {offsets = [0, 2, 0], sizes = [1, 16, 20], strides = [1, 1, 1]} : vector<1x20x20xf32> to vector<1x16x20xf32>
    %cst_3 = arith.constant 0.402619958 : f32
    %9 = vector.broadcast %cst_3 : f32 to vector<1x16x20xf32>
    %10 = arith.mulf %9, %8 : vector<1x16x20xf32>
    %11 = arith.addf %7, %10 : vector<1x16x20xf32>
    %12 = vector.extract_strided_slice %0 {offsets = [0, 3, 0], sizes = [1, 16, 20], strides = [1, 1, 1]} : vector<1x20x20xf32> to vector<1x16x20xf32>
    %cst_4 = arith.constant 0.244201347 : f32
    %13 = vector.broadcast %cst_4 : f32 to vector<1x16x20xf32>
    %14 = arith.mulf %13, %12 : vector<1x16x20xf32>
    %15 = arith.addf %11, %14 : vector<1x16x20xf32>
    %16 = vector.extract_strided_slice %0 {offsets = [0, 4, 0], sizes = [1, 16, 20], strides = [1, 1, 1]} : vector<1x20x20xf32> to vector<1x16x20xf32>
    %cst_5 = arith.constant 0.054488685 : f32
    %17 = vector.broadcast %cst_5 : f32 to vector<1x16x20xf32>
    %18 = arith.mulf %17, %16 : vector<1x16x20xf32>
    %19 = arith.addf %15, %18 : vector<1x16x20xf32>
    %20 = vector.extract_strided_slice %19 {offsets = [0, 0, 0], sizes = [1, 16, 16], strides = [1, 1, 1]} : vector<1x16x20xf32> to vector<1x16x16xf32>
    %cst_6 = arith.constant 0.054488685 : f32
    %21 = vector.broadcast %cst_6 : f32 to vector<1x16x16xf32>
    %22 = arith.mulf %21, %20 : vector<1x16x16xf32>
    %23 = vector.extract_strided_slice %19 {offsets = [0, 0, 1], sizes = [1, 16, 16], strides = [1, 1, 1]} : vector<1x16x20xf32> to vector<1x16x16xf32>
    %cst_7 = arith.constant 0.244201347 : f32
    %24 = vector.broadcast %cst_7 : f32 to vector<1x16x16xf32>
    %25 = arith.mulf %24, %23 : vector<1x16x16xf32>
    %26 = arith.addf %22, %25 : vector<1x16x16xf32>
    %27 = vector.extract_strided_slice %19 {offsets = [0, 0, 2], sizes = [1, 16, 16], strides = [1, 1, 1]} : vector<1x16x20xf32> to vector<1x16x16xf32>
    %cst_8 = arith.constant 0.402619958 : f32
    %28 = vector.broadcast %cst_8 : f32 to vector<1x16x16xf32>
    %29 = arith.mulf %28, %27 : vector<1x16x16xf32>
    %30 = arith.addf %26, %29 : vector<1x16x16xf32>
    %31 = vector.extract_strided_slice %19 {offsets = [0, 0, 3], sizes = [1, 16, 16], strides = [1, 1, 1]} : vector<1x16x20xf32> to vector<1x16x16xf32>
    %cst_9 = arith.constant 0.244201347 : f32
    %32 = vector.broadcast %cst_9 : f32 to vector<1x16x16xf32>
    %33 = arith.mulf %32, %31 : vector<1x16x16xf32>
    %34 = arith.addf %30, %33 : vector<1x16x16xf32>
    %35 = vector.extract_strided_slice %19 {offsets = [0, 0, 4], sizes = [1, 16, 16], strides = [1, 1, 1]} : vector<1x16x20xf32> to vector<1x16x16xf32>
    %cst_10 = arith.constant 0.054488685 : f32
    %36 = vector.broadcast %cst_10 : f32 to vector<1x16x16xf32>
    %37 = arith.mulf %36, %35 : vector<1x16x16xf32>
    %38 = arith.addf %34, %37 : vector<1x16x16xf32>
    %cst_11 = arith.constant 1.000000e-03 : f32
    %39 = vector.broadcast %cst_11 : f32 to vector<1x16x16xf32>
    %40 = arith.maximumf %38, %39 : vector<1x16x16xf32>
    %cst_12 = arith.constant 1.000000e+00 : f32
    %41 = vector.broadcast %cst_12 : f32 to vector<1x16x16xf32>
    %42 = arith.divf %41, %40 : vector<1x16x16xf32>
    %c0_13 = arith.constant 0 : index
    %c0_14 = arith.constant 0 : index
    %c0_15 = arith.constant 0 : index
    %c0_16 = arith.constant 0 : index
    %c0_17 = arith.constant 0 : index
    %43 = vector.load %arg2[%c0_13, %c0_14, %c0_15, %c0_16, %c0_17] : memref<2x1x1x16x16xf32, #tpu.memory_space<vmem>>, vector<2x1x1x16x16xf32>
    %c0_18 = arith.constant 0 : index
    %c0_19 = arith.constant 0 : index
    %c0_20 = arith.constant 0 : index
    %c0_21 = arith.constant 0 : index
    %c0_22 = arith.constant 0 : index
    %44 = vector.load %arg3[%c0_18, %c0_19, %c0_20, %c0_21, %c0_22] : memref<2x1x1x16x16xf32, #tpu.memory_space<vmem>>, vector<2x1x1x16x16xf32>
    %45 = arith.subf %43, %44 : vector<2x1x1x16x16xf32>
    %46 = math.absf %45 : vector<2x1x1x16x16xf32>
    %47 = vector.shape_cast %42 : vector<1x16x16xf32> to vector<1x1x1x16x16xf32>
    %48 = vector.broadcast %47 : vector<1x1x1x16x16xf32> to vector<2x1x1x16x16xf32>
    %49 = arith.mulf %46, %48 : vector<2x1x1x16x16xf32>
    %50 = vector.shape_cast %49 : vector<2x1x1x16x16xf32> to vector<1x2x1x1x16x16xf32>
    %cst_23 = arith.constant dense<0.000000e+00> : vector<1xf32>
    %51 = vector.multi_reduction <add>, %50, %cst_23 [1, 2, 3, 4, 5] : vector<1x2x1x1x16x16xf32> to vector<1xf32>
    %52 = vector.shape_cast %51 : vector<1xf32> to vector<1x1x1x1x1x1xf32>
    %53 = vector.extract %52[0, 0, 0, 0, 0, 0] : f32 from vector<1x1x1x1x1x1xf32>
    %cst_24 = arith.constant 5.120000e+02 : f32
    %54 = arith.divf %53, %cst_24 : f32
    %55 = vector.broadcast %54 : f32 to vector<1x8x128xf32>
    %c0_25 = arith.constant 0 : index
    %c0_26 = arith.constant 0 : index
    %c0_27 = arith.constant 0 : index
    %56 = vector.load %arg4[%c0_25, %c0_26, %c0_27] : memref<1x8x128xf32, #tpu.memory_space<vmem>>, vector<1x8x128xf32>
    tpu.vector_store %arg4[%c0_25, %c0_26, %c0_27], %55 {strides = array<i32>} : memref<1x8x128xf32, #tpu.memory_space<vmem>>, vector<1x8x128xf32>,
    return
  }
  func.func @transform_0(%arg0: i32) -> (i32, i32, i32) {
    %c0_i32 = arith.constant 0 : i32
    %c0_i32_0 = arith.constant 0 : i32
    %c0_i32_1 = arith.constant 0 : i32
    return %arg0, %c0_i32, %c0_i32_0 : i32, i32, i32
  }
  func.func @transform_1(%arg0: i32) -> (i32, i32, i32, i32, i32) {
    %c0_i32 = arith.constant 0 : i32
    %c0_i32_0 = arith.constant 0 : i32
    %c0_i32_1 = arith.constant 0 : i32
    %c0_i32_2 = arith.constant 0 : i32
    %c0_i32_3 = arith.constant 0 : i32
    return %c0_i32, %c0_i32_0, %arg0, %c0_i32_1, %c0_i32_2 : i32, i32, i32, i32, i32
  }
  func.func @transform_2(%arg0: i32) -> (i32, i32, i32, i32, i32) {
    %c0_i32 = arith.constant 0 : i32
    %c0_i32_0 = arith.constant 0 : i32
    %c0_i32_1 = arith.constant 0 : i32
    %c0_i32_2 = arith.constant 0 : i32
    %c0_i32_3 = arith.constant 0 : i32
    return %c0_i32, %c0_i32_0, %arg0, %c0_i32_1, %c0_i32_2 : i32, i32, i32, i32, i32
  }
  func.func @transform_3(%arg0: i32) -> (i32, i32, i32) {
    %c0_i32 = arith.constant 0 : i32
    %c0_i32_0 = arith.constant 0 : i32
    %c0_i32_1 = arith.constant 0 : i32
    return %arg0, %c0_i32, %c0_i32_0 : i32, i32, i32
  }
}

</mosaic_0001>

<llo_original>
// kernel: tpu_custom_call.1
$region0: #{tpu_custom_call.1}
  #allocation0 [shape = 'u32[]', space=smem, size = 0x4, offset = 0x4, fixed_abs, tag = 'smem constant byte address 0x4 - core index']
  #allocation1 [shape = 'u32[144,128]{1,0:T(1,128)}', space=vmem, size = 0x12000, scoped, tag = 'internal scratch']
  #allocation9 [shape = 's32[]', space=sflag, size = 0x4, offset = 0, fixed_abs, tag = 'sflag constant byte address 0x0 - dummy sync flag']
  #allocation11 [shape = 's32[]', space=sflag, size = 0x4, offset = 0, fixed_abs, tag = 'sflag constant byte address 0x0 - dummy sync flag']
  %s0 = inlined_call_operand.hbm [shape: f32[3,20,20], index: 0, kind: input, shape index: {}]
  %s1 = inlined_call_operand.hbm [shape: f32[2,1,3,16,16], index: 1, kind: input, shape index: {}]
  %s2 = inlined_call_operand.hbm [shape: f32[2,1,3,16,16], index: 2, kind: input, shape index: {}]
  %s3 = inlined_call_operand.hbm [shape: f32[3,8,128], index: 3, kind: output, shape index: {}]
  %s4 = sld [smem:[#allocation0]]
  $region57: #{tpu_custom_call.1} parent=0
    _
  %s6 = ssub.s32 1, %s4
  %s7 = scalar_select 0, %s6, %s4
  $region1: #{tpu_custom_call.1} parent=0
    #allocation2 [shape = 'u8[24576]{0}', space=vmem, size = 0x6000, scoped, tag = 'input window, operand 0']
    #allocation3 [shape = 's32[2]{0}', space=sflag, size = 0x8, scoped, tag = 'scoped memory for tpu_custom_call.1']
    #allocation4 [shape = 's32[2]{0}', space=sflag, size = 0x8, scoped, tag = 'scoped memory for tpu_custom_call.1']
    #allocation5 [shape = 'u8[32768]{0}', space=vmem, size = 0x8000, scoped, tag = 'input window, operand 1']
    #allocation6 [shape = 's32[2]{0}', space=sflag, size = 0x8, scoped, tag = 'scoped memory for tpu_custom_call.1']
    #allocation7 [shape = 'u8[32768]{0}', space=vmem, size = 0x8000, scoped, tag = 'input window, operand 2']
    #allocation8 [shape = 'u8[8192]{0}', space=vmem, size = 0x2000, scoped, tag = 'output window, operand 0']
    %8 = vsyncpa [#allocation3], 0
    %s9 = scalar_lea.sflag [#allocation3], 1
    %10 = vsyncpa %s9, 0
    %11 = vsyncpa [#allocation6], 0
    %s12 = scalar_lea.sflag [#allocation6], 1
    %13 = vsyncpa %s12, 0
    %14 = vsyncpa [#allocation4], 0
    %s15 = scalar_lea.sflag [#allocation4], 1
    %16 = vsyncpa %s15, 0
    loop: start=0, step=1, limit=5
    $region2: #{tpu_custom_call.1} parent=1 // loop_pre_header
      _
    $region3: #{tpu_custom_call.1} parent=1 // loop_header
      %s18 = sphi 0, %s22
      %p19 = scmp.ge.s32.totalorder %s18, 5
      %s28 = sphi 0, %s30
      %s31 = sphi 0, %s28
      %s32 = sphi 0, %s31
      %s48 = sphi 0, %s32
      %s54 = sphi 0, %s56
      %s57 = sphi 0, %s54
      %s58 = sphi 0, %s57
      %s74 = sphi 0, %s58
      %s80 = sphi 0, %s82
      %s83 = sphi 0, %s80
      %s84 = sphi 0, %s83
      %s100 = sphi 0, %s84
      %s106 = sphi 0, %s108
      %s109 = sphi 0, %s106
      %s110 = sphi 0, %s109
      %s126 = sphi 0, %s110
    $region4: #{tpu_custom_call.1} parent=1 // loop_header_branch
      %21 = sbr.rel (%p19) target = $region8
    $region5: #{tpu_custom_call.1} parent=1 // loop_body
      %s23 = ssub.s32 %s18, 1
      %s24 = ssub.s32 %s18, 2
      %s25 = sadd.s32 %s18, 1
      %s26 = ssub.s32 %s18, %s25
      %p27 = scmp.eq.s32.totalorder %s26, 0
      %s29 = sadd.s32 %s28, 1
      %s30 = scalar_select %p27, %s28, %s29
      %p33 = pneg %p27
      %p34 = scmp.eq.s32.totalorder %s18, 2
      %p35 = por %p33, %p34
      %p36 = scmp.ne.s32.totalorder %s28, %s31
      %p37 = scmp.eq.s32.totalorder %s18, 0
      %p38 = por %p36, %p37
      %p39 = scmp.ne.s32.totalorder %s28, %s31
      %p40 = scmp.eq.s32.totalorder %s23, 2
      %p41 = por %p39, %p40
      %p42 = scmp.ne.s32.totalorder %s31, %s32
      %p43 = scmp.eq.s32.totalorder %s23, 0
      %p44 = por %p42, %p43
      %p45 = scmp.ne.s32.totalorder %s31, %s32
      %p46 = scmp.eq.s32.totalorder %s24, 2
      %p47 = por %p45, %p46
      %p49 = scmp.ne.s32.totalorder %s32, %s48
      %p50 = scmp.eq.s32.totalorder %s24, 0
      %p51 = por %p49, %p50
      %s52 = ssub.s32 %s18, %s25
      %p53 = scmp.eq.s32.totalorder %s52, 0
      %s55 = sadd.s32 %s54, 1
      %s56 = scalar_select %p53, %s54, %s55
      %p59 = pneg %p53
      %p60 = scmp.eq.s32.totalorder %s18, 2
      %p61 = por %p59, %p60
      %p62 = scmp.ne.s32.totalorder %s54, %s57
      %p63 = scmp.eq.s32.totalorder %s18, 0
      %p64 = por %p62, %p63
      %p65 = scmp.ne.s32.totalorder %s54, %s57
      %p66 = scmp.eq.s32.totalorder %s23, 2
      %p67 = por %p65, %p66
      %p68 = scmp.ne.s32.totalorder %s57, %s58
      %p69 = scmp.eq.s32.totalorder %s23, 0
      %p70 = por %p68, %p69
      %p71 = scmp.ne.s32.totalorder %s57, %s58
      %p72 = scmp.eq.s32.totalorder %s24, 2
      %p73 = por %p71, %p72
      %p75 = scmp.ne.s32.totalorder %s58, %s74
      %p76 = scmp.eq.s32.totalorder %s24, 0
      %p77 = por %p75, %p76
      %s78 = ssub.s32 %s18, %s25
      %p79 = scmp.eq.s32.totalorder %s78, 0
      %s81 = sadd.s32 %s80, 1
      %s82 = scalar_select %p79, %s80, %s81
      %p85 = pneg %p79
      %p86 = scmp.eq.s32.totalorder %s18, 2
      %p87 = por %p85, %p86
      %p88 = scmp.ne.s32.totalorder %s80, %s83
      %p89 = scmp.eq.s32.totalorder %s18, 0
      %p90 = por %p88, %p89
      %p91 = scmp.ne.s32.totalorder %s80, %s83
      %p92 = scmp.eq.s32.totalorder %s23, 2
      %p93 = por %p91, %p92
      %p94 = scmp.ne.s32.totalorder %s83, %s84
      %p95 = scmp.eq.s32.totalorder %s23, 0
      %p96 = por %p94, %p95
      %p97 = scmp.ne.s32.totalorder %s83, %s84
      %p98 = scmp.eq.s32.totalorder %s24, 2
      %p99 = por %p97, %p98
      %p101 = scmp.ne.s32.totalorder %s84, %s100
      %p102 = scmp.eq.s32.totalorder %s24, 0
      %p103 = por %p101, %p102
      %s104 = ssub.s32 %s18, %s25
      %p105 = scmp.eq.s32.totalorder %s104, 0
      %s107 = sadd.s32 %s106, 1
      %s108 = scalar_select %p105, %s106, %s107
      %p111 = pneg %p105
      %p112 = scmp.eq.s32.totalorder %s18, 2
      %p113 = por %p111, %p112
      %p114 = scmp.ne.s32.totalorder %s106, %s109
      %p115 = scmp.eq.s32.totalorder %s18, 0
      %p116 = por %p114, %p115
      %p117 = scmp.ne.s32.totalorder %s106, %s109
      %p118 = scmp.eq.s32.totalorder %s23, 2
      %p119 = por %p117, %p118
      %p120 = scmp.ne.s32.totalorder %s109, %s110
      %p121 = scmp.eq.s32.totalorder %s23, 0
      %p122 = por %p120, %p121
      %p123 = scmp.ne.s32.totalorder %s109, %s110
      %p124 = scmp.eq.s32.totalorder %s24, 2
      %p125 = por %p123, %p124
      %p127 = scmp.ne.s32.totalorder %s110, %s126
      %p128 = scmp.eq.s32.totalorder %s24, 0
      %p129 = por %p127, %p128
      %p130 = scmp.le.s32.totalorder 1, %s18
      %p131 = scmp.lt.s32.totalorder %s18, 4
      %p132 = pnand %p130, %p131
      %p133 = pneg %p132
      // Predicated region
      $region9: #{tpu_custom_call.1} parent=5 // pred_check
        _
      $region10: #{tpu_custom_call.1} parent=5 // pred_check_branch
        %135 = sbr.rel (%p132) target = $region12
      $region11: #{tpu_custom_call.1} parent=5 // pred_region
        %s136 = ssub.s32 %s18, 1
      $region12: #{tpu_custom_call.1} parent=5 // pred_fallthru
        _
      %p137 = scmp.lt.s32.totalorder %s18, 3
      // Predicated region
      $region13: #{tpu_custom_call.1} parent=5 // pred_check
        %p138 = pneg %p137
      $region14: #{tpu_custom_call.1} parent=5 // pred_check_branch
        %140 = sbr.rel (%p138) target = $region16
      $region15: #{tpu_custom_call.1} parent=5 // pred_region
        // Predicated region
        $region17: #{tpu_custom_call.1} parent=15 // pred_check
          %p141 = pneg %p38
        $region18: #{tpu_custom_call.1} parent=15 // pred_check_branch
          %143 = sbr.rel (%p141) target = $region20
        $region19: #{tpu_custom_call.1} parent=15 // pred_region
          %s144 = sand.u32 %s28, 1
          %s145 = scalar_lea.sflag [#allocation3], %s144
          %s146 = sand.u32 %s28, 1
          %s147 = smul.addr %s146, 24
          %s148 = scalar_lea.vmem [#allocation2], %s147
          %s150 = ssub.s32 384, 384
          %151 = vsyncadd %s145, %s150
          %s152 = smul.addr %s18, 3
          %s153 = smul.addr %s152, 128
          %s154 = scalar_lea.hbm %s0, %s153
          %s155 = sshll.u32 %s148, 4
          %s156 = int_to_ptr.vmem [resolvable:$true] %s155
          %161 = dma.hbm_to_vmem [thread:$0]  %s154, 384, %s156, %s145, 128, 128, 8
        $region20: #{tpu_custom_call.1} parent=15 // pred_fallthru
          _
        // Predicated region
        $region21: #{tpu_custom_call.1} parent=15 // pred_check
          %p162 = pneg %p64
        $region22: #{tpu_custom_call.1} parent=15 // pred_check_branch
          %164 = sbr.rel (%p162) target = $region24
        $region23: #{tpu_custom_call.1} parent=15 // pred_region
          #allocation10 [shape = 'u32[6]{0}', space=smem, size = 0x18, scoped, tag = 'DMA stride descriptor']
          %s165 = sand.u32 %s18, 1
          %s166 = scalar_lea.sflag [#allocation6], %s165
          %s167 = sand.u32 %s54, 1
          %s168 = smul.addr %s167, 32
          %s169 = scalar_lea.vmem [#allocation5], %s168
          %s171 = ssub.s32 512, 512
          %172 = vsyncadd %s166, %s171
          %s173 = smul.addr %s18, 2
          %s174 = smul.addr %s173, 128
          %s175 = scalar_lea.hbm %s1, %s174
          %s177 = sshll.u32 1, 14
          %s178 = sxor.u32 4294967295, %s177
          %s180 = sld [smem:[#allocation0]]
          %s181 = sadd.s32 2, %s180
          %s183 = sshll.u32 7, 26
          %s184 = sxor.u32 4294967295, %s183
          %s185 = sand.u32 0, %s184
          %s186 = sshll.u32 %s181, 26
          %s187 = sor.u32 %s185, %s186
          %s188 = sshll.u32 %s169, 4
          %s189 = int_to_ptr.vmem [resolvable:$true] %s188
          %195 = sst [smem:[#allocation10]] 768
          %s196 = scalar_lea.smem [#allocation10], 1
          %197 = sst [smem:[%s196]] 256
          %s198 = scalar_lea.smem [#allocation10], 2
          %199 = sst [smem:[%s198]] 2
          %s200 = scalar_lea.smem [#allocation10], 3
          %201 = sst [smem:[%s200]] 128
          %s202 = scalar_lea.smem [#allocation10], 4
          %203 = sst [smem:[%s202]] 128
          %s204 = scalar_lea.smem [#allocation10], 5
          %205 = sst [smem:[%s204]] 8
          %207 = dma.general %s175, 512, %s189, %s166, [#allocation9], [#allocation10], %s187, 0
        $region24: #{tpu_custom_call.1} parent=15 // pred_fallthru
          _
        // Predicated region
        $region25: #{tpu_custom_call.1} parent=15 // pred_check
          %p208 = pneg %p90
        $region26: #{tpu_custom_call.1} parent=15 // pred_check_branch
          %210 = sbr.rel (%p208) target = $region28
        $region27: #{tpu_custom_call.1} parent=15 // pred_region
          #allocation12 [shape = 'u32[6]{0}', space=smem, size = 0x18, scoped, tag = 'DMA stride descriptor']
          %s211 = sand.u32 %s18, 1
          %s212 = scalar_lea.sflag [#allocation6], %s211
          %s213 = sand.u32 %s80, 1
          %s214 = smul.addr %s213, 32
          %s215 = scalar_lea.vmem [#allocation7], %s214
          %s217 = ssub.s32 512, 512
          %218 = vsyncadd %s212, %s217
          %s219 = smul.addr %s18, 2
          %s220 = smul.addr %s219, 128
          %s221 = scalar_lea.hbm %s2, %s220
          %s223 = sshll.u32 1, 14
          %s224 = sxor.u32 4294967295, %s223
          %s226 = sld [smem:[#allocation0]]
          %s227 = sadd.s32 2, %s226
          %s229 = sshll.u32 7, 26
          %s230 = sxor.u32 4294967295, %s229
          %s231 = sand.u32 0, %s230
          %s232 = sshll.u32 %s227, 26
          %s233 = sor.u32 %s231, %s232
          %s234 = sshll.u32 %s215, 4
          %s235 = int_to_ptr.vmem [resolvable:$true] %s234
          %241 = sst [smem:[#allocation12]] 768
          %s242 = scalar_lea.smem [#allocation12], 1
          %243 = sst [smem:[%s242]] 256
          %s244 = scalar_lea.smem [#allocation12], 2
          %245 = sst [smem:[%s244]] 2
          %s246 = scalar_lea.smem [#allocation12], 3
          %247 = sst [smem:[%s246]] 128
          %s248 = scalar_lea.smem [#allocation12], 4
          %249 = sst [smem:[%s248]] 128
          %s250 = scalar_lea.smem [#allocation12], 5
          %251 = sst [smem:[%s250]] 8
          %253 = dma.general %s221, 512, %s235, %s212, [#allocation11], [#allocation12], %s233, 0
        $region28: #{tpu_custom_call.1} parent=15 // pred_fallthru
          _
      $region16: #{tpu_custom_call.1} parent=5 // pred_fallthru
        _
      %p254 = scmp.le.s32.totalorder 1, %s18
      %p255 = scmp.lt.s32.totalorder %s18, 4
      %p256 = pnand %p254, %p255
      %p257 = pneg %p256
      // Predicated region
      $region29: #{tpu_custom_call.1} parent=5 // pred_check
        _
      $region30: #{tpu_custom_call.1} parent=5 // pred_check_branch
        %259 = sbr.rel (%p256) target = $region32
      $region31: #{tpu_custom_call.1} parent=5 // pred_region
        %s260 = ssub.s32 %s18, 1
        %s261 = sand.u32 %s31, 1
        %s262 = scalar_lea.sflag [#allocation3], %s261
        %s263 = sand.u32 %s31, 1
        %s264 = smul.addr %s263, 24
        %s265 = scalar_lea.vmem [#allocation2], %s264
        // Predicated region
        $region33: #{tpu_custom_call.1} parent=31 // pred_check
          %p266 = pneg %p44
        $region34: #{tpu_custom_call.1} parent=31 // pred_check_branch
          %268 = sbr.rel (%p266) target = $region36
        $region35: #{tpu_custom_call.1} parent=31 // pred_region
          %269 = dma.done %s262, 384
        $region36: #{tpu_custom_call.1} parent=31 // pred_fallthru
          _
        %s270 = sand.u32 %s23, 1
        %s271 = scalar_lea.sflag [#allocation6], %s270
        %s272 = sand.u32 %s57, 1
        %s273 = smul.addr %s272, 32
        %s274 = scalar_lea.vmem [#allocation5], %s273
        // Predicated region
        $region37: #{tpu_custom_call.1} parent=31 // pred_check
          %p275 = pneg %p70
        $region38: #{tpu_custom_call.1} parent=31 // pred_check_branch
          %277 = sbr.rel (%p275) target = $region40
        $region39: #{tpu_custom_call.1} parent=31 // pred_region
          %278 = dma.done %s271, 512
        $region40: #{tpu_custom_call.1} parent=31 // pred_fallthru
          _
        %s279 = sand.u32 %s23, 1
        %s280 = scalar_lea.sflag [#allocation6], %s279
        %s281 = sand.u32 %s83, 1
        %s282 = smul.addr %s281, 32
        %s283 = scalar_lea.vmem [#allocation7], %s282
        // Predicated region
        $region41: #{tpu_custom_call.1} parent=31 // pred_check
          %p284 = pneg %p96
        $region42: #{tpu_custom_call.1} parent=31 // pred_check_branch
          %286 = sbr.rel (%p284) target = $region44
        $region43: #{tpu_custom_call.1} parent=31 // pred_region
          %287 = dma.done %s280, 512
        $region44: #{tpu_custom_call.1} parent=31 // pred_fallthru
          _
        %s288 = sand.u32 %s31, 1
        %s289 = scalar_lea.sflag [#allocation3], %s288
        %s290 = sand.u32 %s31, 1
        %s291 = smul.addr %s290, 24
        %s292 = scalar_lea.vmem [#allocation2], %s291
        %p293 = pneg %p44
        %p294 = pneg %p41
        %s295 = sand.u32 %s23, 1
        %s296 = scalar_lea.sflag [#allocation6], %s295
        %s297 = sand.u32 %s57, 1
        %s298 = smul.addr %s297, 32
        %s299 = scalar_lea.vmem [#allocation5], %s298
        %p300 = pneg %p70
        %p301 = pneg %p67
        %s302 = sand.u32 %s23, 1
        %s303 = scalar_lea.sflag [#allocation6], %s302
        %s304 = sand.u32 %s83, 1
        %s305 = smul.addr %s304, 32
        %s306 = scalar_lea.vmem [#allocation7], %s305
        %p307 = pneg %p96
        %p308 = pneg %p93
        %p309 = pneg %p122
        %p310 = pneg %p119
        %s311 = sand.u32 %s109, 1
        %s312 = scalar_lea.sflag [#allocation4], %s311
        %s313 = sand.u32 %s109, 1
        %s314 = smul.addr %s313, 8
        %s315 = scalar_lea.vmem [#allocation8], %s314
        %v316 = vld [vmem:[%s265] sm:$0xff]
        %v317 = vld [vmem:[%s265 + $0x8] sm:$0xff]
        %v318 = vld [vmem:[%s265 + $0x10] sm:$0xf]
        %v319 = vmul.f32 %v316, 0.054488685
        %v320 = vmul.f32 %v317, 0.054488685
        %v321 = vmul.f32 %v316, 0.24420135
        %v322 = vmul.f32 %v317, 0.24420135
        %v323 = vmul.f32 %v318, 0.24420135
        %vm327 = vcmask 1046528
        %v328 = vrot.slane %v321, 1
        %v329 = vrot.slane %v322, 1
        %v330 = vsel %vm327, %v328, %v329
        %v331 = vrot.slane %v323, 1
        %v332 = vsel %vm327, %v329, %v331
        %v335 = vadd.f32 %v319, %v330
        %v336 = vadd.f32 %v320, %v332
        %v337 = vmul.f32 %v316, 0.40261996
        %v338 = vmul.f32 %v317, 0.40261996
        %v339 = vmul.f32 %v318, 0.40261996
        %vm343 = vcmask 1045504
        %v344 = vrot.slane %v337, 2
        %v345 = vrot.slane %v338, 2
        %v346 = vsel %vm343, %v344, %v345
        %v347 = vrot.slane %v339, 2
        %v348 = vsel %vm343, %v345, %v347
        %v351 = vadd.f32 %v335, %v346
        %v352 = vadd.f32 %v336, %v348
        %vm353 = vcmask 1044480
        %v354 = vrot.slane %v321, 3
        %v355 = vrot.slane %v322, 3
        %v356 = vsel %vm353, %v354, %v355
        %v357 = vrot.slane %v323, 3
        %v358 = vsel %vm353, %v355, %v357
        %v361 = vadd.f32 %v351, %v356
        %v362 = vadd.f32 %v352, %v358
        %v363 = vmul.f32 %v318, 0.054488685
        %vm367 = vcmask 1043456
        %v368 = vrot.slane %v319, 4
        %v369 = vrot.slane %v320, 4
        %v370 = vsel %vm367, %v368, %v369
        %v371 = vrot.slane %v363, 4
        %v372 = vsel %vm367, %v369, %v371
        %v375 = vadd.f32 %v361, %v370
        %v376 = vadd.f32 %v362, %v372
        %v377 = vmul.f32 %v375, 0.054488685
        %v378 = vmul.f32 %v376, 0.054488685
        %v379 = vmul.f32 %v375, 0.24420135
        %v380 = vmul.f32 %v376, 0.24420135
        %383 = vrot.lane.b32.xlu0 %v379, 127
        %v384 = vpop.permute.xlu0 %383
        %385 = vrot.lane.b32.xlu0 %v380, 127
        %v386 = vpop.permute.xlu0 %385
        %v389 = vadd.f32 %v377, %v384
        %v390 = vadd.f32 %v378, %v386
        %v391 = vmul.f32 %v375, 0.40261996
        %v392 = vmul.f32 %v376, 0.40261996
        %395 = vrot.lane.b32.xlu0 %v391, 126
        %v396 = vpop.permute.xlu0 %395
        %397 = vrot.lane.b32.xlu0 %v392, 126
        %v398 = vpop.permute.xlu0 %397
        %v401 = vadd.f32 %v389, %v396
        %v402 = vadd.f32 %v390, %v398
        %403 = vrot.lane.b32.xlu0 %v379, 125
        %v404 = vpop.permute.xlu0 %403
        %405 = vrot.lane.b32.xlu0 %v380, 125
        %v406 = vpop.permute.xlu0 %405
        %v409 = vadd.f32 %v401, %v404
        %v410 = vadd.f32 %v402, %v406
        %413 = vrot.lane.b32.xlu0 %v377, 124
        %v414 = vpop.permute.xlu0 %413
        %415 = vrot.lane.b32.xlu0 %v378, 124
        %v416 = vpop.permute.xlu0 %415
        %v419 = vadd.f32 %v409, %v414
        %v420 = vadd.f32 %v410, %v416
        %v421 = vmax.f32 %v419, 0.001
        %v422 = vmax.f32 %v420, 0.001
        %v423 = vrcp.pop %v421
        %v424 = vmul.f32 1.0, %v423
        %v425 = vrcp.pop %v422
        %v426 = vmul.f32 1.0, %v425
        %v427 = vld [vmem:[%s274] sm:$0xff]
        %v428 = vld [vmem:[%s274 + $0x8] sm:$0xff]
        %v429 = vld [vmem:[%s274 + $0x10] sm:$0xff]
        %v430 = vld [vmem:[%s274 + $0x18] sm:$0xff]
        %v431 = vld [vmem:[%s283] sm:$0xff]
        %v432 = vld [vmem:[%s283 + $0x8] sm:$0xff]
        %v433 = vld [vmem:[%s283 + $0x10] sm:$0xff]
        %v434 = vld [vmem:[%s283 + $0x18] sm:$0xff]
        %v435 = vsub.f32 %v427, %v431
        %v436 = vsub.f32 %v428, %v432
        %v437 = vsub.f32 %v429, %v433
        %v438 = vsub.f32 %v430, %v434
        %v439 = vand.u32 2147483647, %v435
        %v440 = vand.u32 2147483647, %v436
        %v441 = vand.u32 2147483647, %v437
        %v442 = vand.u32 2147483647, %v438
        %v443 = vmul.f32 %v439, %v424
        %v444 = vmul.f32 %v440, %v426
        %v445 = vmul.f32 %v441, %v424
        %v446 = vmul.f32 %v442, %v426
        %vm447 = vcmask 130048
        %v448 = vsel %vm447, %v443, 0.0
        %v449 = vsel %vm447, %v444, 0.0
        %v450 = vadd.f32 %v448, %v449
        %v451 = vsel %vm447, %v445, 0.0
        %v452 = vadd.f32 %v450, %v451
        %v453 = vsel %vm447, %v446, 0.0
        %v454 = vadd.f32 %v452, %v453
        %455 = vadd.xlane.f32.xlu0 %v454
        %v456 = vpop.xlane.xlu0 %455
        %v457 = vrot.slane %v456, 4
        %v458 = vadd.f32 %v456, %v457
        %v459 = vrot.slane %v458, 2
        %v460 = vadd.f32 %v458, %v459
        %v461 = vrot.slane %v460, 1
        %v462 = vadd.f32 %v460, %v461
        %s463 = vtos %v462
        %v464 = vrcp.pop 512.0
        %s465 = vtos %v464
        %s466 = smul.f32 %s463, %s465
        %v467 = vstv %s466
        %468 = vst [vmem:[%s315] sm:$0xff] %v467
        %s469 = sand.u32 %s109, 1
        %s470 = scalar_lea.sflag [#allocation4], %s469
        %s471 = sand.u32 %s109, 1
        %s472 = smul.addr %s471, 8
        %s473 = scalar_lea.vmem [#allocation8], %s472
        // Predicated region
        $region45: #{tpu_custom_call.1} parent=31 // pred_check
          %p474 = pneg %p119
        $region46: #{tpu_custom_call.1} parent=31 // pred_check_branch
          %476 = sbr.rel (%p474) target = $region48
        $region47: #{tpu_custom_call.1} parent=31 // pred_region
          %s478 = ssub.s32 128, 128
          %479 = vsyncadd %s470, %s478
          %s480 = smul.addr %s23, 128
          %s481 = scalar_lea.hbm %s3, %s480
          %s483 = sshll.u32 %s473, 4
          %s484 = int_to_ptr.vmem [resolvable:$true] %s483
          %486 = dma.vmem_to_hbm [thread:$0]  %s484, 128, %s481, %s470
        $region48: #{tpu_custom_call.1} parent=31 // pred_fallthru
          _
      $region32: #{tpu_custom_call.1} parent=5 // pred_fallthru
        _
      %p487 = scmp.le.s32.totalorder 2, %s18
      // Predicated region
      $region49: #{tpu_custom_call.1} parent=5 // pred_check
        %p488 = pneg %p487
      $region50: #{tpu_custom_call.1} parent=5 // pred_check_branch
        %490 = sbr.rel (%p488) target = $region52
      $region51: #{tpu_custom_call.1} parent=5 // pred_region
        %s491 = ssub.s32 %s18, 2
        // Predicated region
        $region53: #{tpu_custom_call.1} parent=51 // pred_check
          %p492 = pneg %p125
        $region54: #{tpu_custom_call.1} parent=51 // pred_check_branch
          %494 = sbr.rel (%p492) target = $region56
        $region55: #{tpu_custom_call.1} parent=51 // pred_region
          %s495 = sand.u32 %s110, 1
          %s496 = scalar_lea.sflag [#allocation4], %s495
          %s497 = sand.u32 %s110, 1
          %s498 = smul.addr %s497, 8
          %s499 = scalar_lea.vmem [#allocation8], %s498
          %500 = dma.done %s496, 128
        $region56: #{tpu_custom_call.1} parent=51 // pred_fallthru
          _
      $region52: #{tpu_custom_call.1} parent=5 // pred_fallthru
        _
    $region6: #{tpu_custom_call.1} parent=1 // loop_footer
      %s22 = sadd.s32 1, %s18
    $region7: #{tpu_custom_call.1} parent=1 // loop_footer_branch
      %17 = sbr.rel target = $region3
    $region8: #{tpu_custom_call.1} parent=1 // loop_exit
      _
    %501 = vsyncpa [#allocation3], 1
    %s502 = scalar_lea.sflag [#allocation3], 1
    %503 = vsyncpa %s502, 1
    %504 = vsyncpa [#allocation6], 1
    %s505 = scalar_lea.sflag [#allocation6], 1
    %506 = vsyncpa %s505, 1
    %507 = vsyncpa [#allocation4], 1
    %s508 = scalar_lea.sflag [#allocation4], 1
    %509 = vsyncpa %s508, 1

</llo_original>
